<compile_context>
chip_gen: v7x
topology: tpu7x:2x2x1
jax: 0.10.0
libtpu: 0.0.40
codegen_flags: <defaults>
</compile_context>

<pallas_src>
import functools
import math

import jax
import jax.numpy as jnp
from jax.experimental import pallas as pl
from jax.experimental.pallas import tpu as pltpu


def _round_up(n, m):
    return ((n + m - 1) // m) * m


def _ensemble_kernel(x_ref, w_ref, s_ref, b_ref, o_ref, *, batch, block_b):
    """One grid step per batch tile.

    x_ref: [tB, H]      input tile, original dtype (cast to bf16 in-kernel)
    w_ref: [H, MCp]     fused bf16 weights (resident, single-buffered)
    s_ref: [MCp, MCp]   block-diagonal segment-sum selector (bf16, resident)
    b_ref: [1, MCp]     fused f32 bias (resident)
    o_ref: [1, 1, MCp]  per-tile partial logsumexp over this tile's batch rows
    """
    t = pl.program_id(0)

    # Single fused MXU matmul for all ensemble members: bf16 in, f32 accumulate.
    x = x_ref[...].astype(jnp.bfloat16)
    logits = jnp.dot(x, w_ref[...], preferred_element_type=jnp.float32)
    logits = logits + b_ref[...]                                    # [tB, MCp]

    # log_softmax over each model's class lanes: ONE shared row-max
    # (shift-invariance makes any per-row shift exact), ONE exp pass, and a
    # block-diagonal segment-sum matmul that both sums per model and
    # broadcasts the sum back to that model's lanes.
    rowmax = jnp.max(logits, axis=-1, keepdims=True)                # [tB, 1]
    e = jnp.exp(logits - rowmax)                                    # (0, 1]
    sums = jnp.dot(e.astype(jnp.bfloat16), s_ref[...],
                   preferred_element_type=jnp.float32)              # [tB, MCp]
    # Floor only guards log(0) on padded lanes / pathological underflow.
    lse_c = rowmax + jnp.log(jnp.maximum(sums, jnp.finfo(jnp.float32).tiny))
    logp = logits - lse_c                                           # log_softmax

    # Mask padded / ragged batch rows (any garbage is confined to its own row
    # up to here) so they contribute exp(-inf) = 0 to the batch reduction.
    row = t * block_b + jax.lax.broadcasted_iota(jnp.int32, (block_b, 1), 0)
    logp = jnp.where(row < batch, logp, -jnp.inf)

    # Partial logsumexp over this tile's batch rows (per lane).
    bmax = jnp.max(logp, axis=0, keepdims=True)                     # [1, MCp]
    part = bmax + jnp.log(jnp.sum(jnp.exp(logp - bmax), axis=0, keepdims=True))

    # Single lane-dense store of the whole slab.
    o_ref[...] = part[None].astype(o_ref.dtype)


def prepare_classifier_ensemble_params(W, b):
    """One-time weight fusion (hoisted out of the per-call path).

    W: [M, H, C], b: [M, C]  ->  (w2 [H, MCp] bf16, b2 [1, MCp] f32,
    sel [MCp, MCp] bf16 block-diagonal segment-sum selector).
    """
    M, H, C = W.shape
    MC = M * C
    MCp = _round_up(MC, 128)

    w2 = jnp.transpose(W, (1, 0, 2)).reshape(H, MC).astype(jnp.bfloat16)
    b2 = b.reshape(1, MC).astype(jnp.float32)
    if MCp != MC:
        w2 = jnp.pad(w2, ((0, 0), (0, MCp - MC)))
        b2 = jnp.pad(b2, ((0, 0), (0, MCp - MC)))

    # sel[k, j] = 1 iff lanes k and j belong to the same model's class block;
    # padded lanes get all-zero rows AND columns, so they never contaminate
    # real lanes and produce only finite junk that the epilogue slices off.
    lane = jnp.arange(MCp)
    model_id = jnp.where(lane < MC, lane // C, -1)
    sel = ((model_id[:, None] == model_id[None, :]) &
           (model_id[:, None] >= 0)).astype(jnp.bfloat16)
    # TODO(synk): for very large M*C, factor sel into [MCp, Mp] @ [Mp, MCp]
    # so the selector stays linear (not quadratic) in M*C.
    return w2, b2, sel


def _vmem_limit_bytes(block_b, H, MCp, x_itemsize):
    """Scoped-VMEM limit sized from the actual buffers, with headroom."""
    lane = lambda n: _round_up(n, 128)
    est = (2 * _round_up(block_b, 8) * lane(H) * x_itemsize   # x tile (double-buffered)
           + _round_up(H, 16) * MCp * 2                       # W2 bf16 (single-buffered)
           + MCp * MCp * 2                                    # selector bf16 (single)
           + 8 * MCp * 4                                      # bias f32
           + 2 * 8 * MCp * 4                                  # out tile (double-buffered)
           + 6 * _round_up(block_b, 8) * MCp * 4)             # in-kernel f32 temporaries
    try:
        vmem_cap = pltpu.get_tpu_info().vmem_capacity_bytes
    except Exception:
        vmem_cap = 64 << 20                                   # v7x per-TC physical
    return int(min(max(int(est * 1.3) + (2 << 20), 32 << 20),
                   int(vmem_cap * 0.75)))


def _resident_spec(shape):
    """Constant-index resident block; single-buffered where supported."""
    index_map = lambda t: (0,) * len(shape)
    try:
        return pl.BlockSpec(shape, index_map, pipeline_mode=pl.Buffered(1))
    except TypeError:  # older jax without pipeline_mode: default double-buffer
        return pl.BlockSpec(shape, index_map)


def classifier_ensemble_fused(x, w2, b2, sel, *, num_models, num_classes,
                              block_b=512):
    """x: [B, H]; fused params from prepare_classifier_ensemble_params.
    Returns [num_models, num_classes] (torch-exact semantics)."""
    B, H = x.shape
    MCp = w2.shape[1]
    MC = num_models * num_classes

    # Batch tiling: multiples of 8 sublanes; >=2 tiles when B > 16 so both
    # v7x TensorCores get work; never larger than the rounded-up batch.
    block_b = max(8, _round_up(block_b, 8))
    if B > 16:
        block_b = min(block_b, _round_up(pl.cdiv(B, 2), 8))
    block_b = min(block_b, _round_up(B, 8))
    num_tiles = pl.cdiv(B, block_b)

    kernel = functools.partial(_ensemble_kernel, batch=B, block_b=block_b)

    partials = pl.pallas_call(
        kernel,
        out_shape=jax.ShapeDtypeStruct((num_tiles, 1, MCp), jnp.float32),
        grid_spec=pltpu.PrefetchScalarGridSpec(
            num_scalar_prefetch=0,
            grid=(num_tiles,),
            in_specs=[
                pl.BlockSpec((block_b, H), lambda t: (t, 0)),  # x tile (ragged ok)
                _resident_spec((H, MCp)),                      # fused weights
                _resident_spec((MCp, MCp)),                    # segment-sum selector
                _resident_spec((1, MCp)),                      # fused bias
            ],
            out_specs=pl.BlockSpec((1, 1, MCp), lambda t: (t, 0, 0)),
        ),
        compiler_params=pltpu.CompilerParams(
            dimension_semantics=("parallel",),
            vmem_limit_bytes=_vmem_limit_bytes(block_b, H, MCp,
                                               x.dtype.itemsize),
        ),
    )(x, w2, sel, b2)
    # TODO(synk): add a second "arbitrary" grid axis over H (K-tiling) with an
    # f32 accumulator scratch for hidden sizes where W2 [H, MCp] exceeds VMEM.

    # Tiny epilogue: combine per-tile partial logsumexps, drop padded lanes,
    # subtract log(true batch size).
    red = jax.nn.logsumexp(partials[:, 0, :], axis=0)[:MC] - math.log(B)
    return red.reshape(num_models, num_classes)


def classifier_ensemble(x, W, b, *, block_b=512):
    """Convenience wrapper: x [B,H], W [M,H,C], b [M,C] -> [M,C]."""
    M, _, C = W.shape
    w2, b2, sel = prepare_classifier_ensemble_params(W, b)
    return classifier_ensemble_fused(x, w2, b2, sel, num_models=M,
                                     num_classes=C, block_b=block_b)


def _reference(x, W, b, *, matmul_dtype=jnp.float32):
    """Pure-JAX mirror of the exact PyTorch forward (including the
    tensor-iteration transpose inside reduce_ensemble_logits)."""
    logits = jnp.einsum("bh,mhc->bmc", x.astype(matmul_dtype),
                        W.astype(matmul_dtype),
                        preferred_element_type=jnp.float32) + b[None]   # [B,M,C]
    t = jnp.transpose(logits, (1, 0, 2))                                # [M,B,C]
    logp = jax.nn.log_softmax(t, axis=-1)
    return jax.nn.logsumexp(logp, axis=1) - math.log(x.shape[0])        # [M,C]


if __name__ == "__main__":
    # Small shapes that still exercise the ragged batch tile (72 = 2 tiles of
    # 40 with 8 masked rows) and the M*C -> 128 lane padding (4*10 = 40).
    B, H, C, M = 72, 32, 10, 4

    key = jax.random.PRNGKey(0)
    kx, kw, kb = jax.random.split(key, 3)

    x = jax.random.normal(kx, (B, H), dtype=jnp.float32)
    bound = 1.0 / math.sqrt(H)   # nn.Linear(H, C)-style init per component
    W = jax.random.uniform(kw, (M, H, C), minval=-bound, maxval=bound,
                           dtype=jnp.float32)
    b = jax.random.uniform(kb, (M, C), minval=-bound, maxval=bound,
                           dtype=jnp.float32)

    out = jax.block_until_ready(classifier_ensemble(x, W, b))
    assert out.shape == (M, C)
    assert bool(jnp.all(jnp.isfinite(out)))

    # Structural check: same bf16-rounded matmul inputs -> tight match (slack
    # covers the bf16 segment-sum accumulation inside the kernel).
    ref_bf16 = _reference(x, W, b, matmul_dtype=jnp.bfloat16)
    assert jnp.allclose(out, ref_bf16, atol=1e-2, rtol=1e-2), (out, ref_bf16)

    # Semantic check vs the exact f32 torch forward; the looser tolerance only
    # accounts for the intentional bf16 cast of the matmul inputs.
    ref_f32 = _reference(x, W, b)
    assert jnp.allclose(out, ref_f32, atol=5e-2, rtol=5e-2), (out, ref_f32)

    print("KERNEL_OK")
</pallas_src>

<mosaic_0001>
module attributes {stable_mosaic.version = 11 : i64} {
  func.func @_ensemble_kernel(%arg0: i32, %arg1: memref<40x32xf32, #tpu.memory_space<vmem>>, %arg2: memref<32x128xbf16, #tpu.memory_space<vmem>>, %arg3: memref<128x128xbf16, #tpu.memory_space<vmem>>, %arg4: memref<1x128xf32, #tpu.memory_space<vmem>>, %arg5: memref<1x1x128xf32, #tpu.memory_space<vmem>>) attributes {dimension_semantics = [#tpu.dimension_semantics<parallel>], iteration_bounds = array<i64: 2>, scalar_prefetch = 0 : i64, scratch_operands = 0 : i64, tpu.core_type = #tpu.core_type<tc>, window_params = [{transform_indices = @transform_0, window_bounds = array<i64: 40, 32>}, {pipeline_mode = #tpu.pipeline_mode<synchronous>, transform_indices = @transform_1, window_bounds = array<i64: 32, 128>}, {pipeline_mode = #tpu.pipeline_mode<synchronous>, transform_indices = @transform_2, window_bounds = array<i64: 128, 128>}, {pipeline_mode = #tpu.pipeline_mode<synchronous>, transform_indices = @transform_3, window_bounds = array<i64: 1, 128>}, {transform_indices = @transform_4, window_bounds = array<i64: 1, 1, 128>}]} {
    %c0 = arith.constant 0 : index
    %c0_0 = arith.constant 0 : index
    %0 = vector.load %arg1[%c0, %c0_0] : memref<40x32xf32, #tpu.memory_space<vmem>>, vector<40x32xf32>
    %1 = arith.truncf %0 : vector<40x32xf32> to vector<40x32xbf16>
    %c0_1 = arith.constant 0 : index
    %c0_2 = arith.constant 0 : index
    %2 = vector.load %arg2[%c0_1, %c0_2] : memref<32x128xbf16, #tpu.memory_space<vmem>>, vector<32x128xbf16>
    %cst = arith.constant dense<0.000000e+00> : vector<40x128xf32>
    %3 = tpu.matmul %1, %2, %cst {dimension_numbers = #tpu.dot_dimension_numbers<[1], [0], [0], [1], [0, 0, 1, 1], [], []>} : vector<40x32xbf16>, vector<32x128xbf16>, vector<40x128xf32> -> vector<40x128xf32>
    %c0_3 = arith.constant 0 : index
    %c0_4 = arith.constant 0 : index
    %4 = vector.load %arg4[%c0_3, %c0_4] : memref<1x128xf32, #tpu.memory_space<vmem>>, vector<1x128xf32>
    %5 = vector.broadcast %4 : vector<1x128xf32> to vector<40x128xf32>
    %6 = arith.addf %3, %5 : vector<40x128xf32>
    %cst_5 = arith.constant dense<0xFF800000> : vector<40xf32>
    %7 = vector.multi_reduction <maximumf>, %6, %cst_5 [1] : vector<40x128xf32> to vector<40xf32>
    %8 = vector.shape_cast %7 : vector<40xf32> to vector<40x1xf32>
    %9 = vector.broadcast %8 : vector<40x1xf32> to vector<40x128xf32>
    %10 = arith.subf %6, %9 : vector<40x128xf32>
    %11 = math.exp %10 : vector<40x128xf32>
    %12 = arith.truncf %11 : vector<40x128xf32> to vector<40x128xbf16>
    %c0_6 = arith.constant 0 : index
    %c0_7 = arith.constant 0 : index
    %13 = vector.load %arg3[%c0_6, %c0_7] : memref<128x128xbf16, #tpu.memory_space<vmem>>, vector<128x128xbf16>
    %cst_8 = arith.constant dense<0.000000e+00> : vector<40x128xf32>
    %14 = tpu.matmul %12, %13, %cst_8 {dimension_numbers = #tpu.dot_dimension_numbers<[1], [0], [0], [1], [0, 0, 1, 1], [], []>} : vector<40x128xbf16>, vector<128x128xbf16>, vector<40x128xf32> -> vector<40x128xf32>
    %cst_9 = arith.constant 1.17549435E-38 : f32
    %15 = vector.broadcast %cst_9 : f32 to vector<40x128xf32>
    %16 = arith.maximumf %14, %15 : vector<40x128xf32>
    %17 = math.log %16 : vector<40x128xf32>
    %18 = vector.broadcast %8 : vector<40x1xf32> to vector<40x128xf32>
    %19 = arith.addf %18, %17 : vector<40x128xf32>
    %20 = arith.subf %6, %19 : vector<40x128xf32>
    %c40_i32 = arith.constant 40 : i32
    %21 = arith.muli %arg0, %c40_i32 : i32
    %22 = tpu.iota {dimensions = array<i32: 0>} : vector<40x1xi32>
    %23 = vector.broadcast %21 : i32 to vector<40x1xi32>
    %24 = arith.addi %23, %22 : vector<40x1xi32>
    %c72_i32 = arith.constant 72 : i32
    %25 = vector.broadcast %c72_i32 : i32 to vector<40x1xi32>
    %26 = arith.cmpi slt, %24, %25 : vector<40x1xi32>
    %cst_10 = arith.constant 0xFF800000 : f32
    %27 = vector.shape_cast %26 : vector<40x1xi1> to vector<40x1xi1>
    %28 = vector.broadcast %27 : vector<40x1xi1> to vector<40x128xi1>
    %29 = vector.broadcast %cst_10 : f32 to vector<40x128xf32>
    %30 = arith.select %28, %20, %29 : vector<40x128xi1>, vector<40x128xf32>
    %cst_11 = arith.constant dense<0xFF800000> : vector<128xf32>
    %31 = vector.multi_reduction <maximumf>, %30, %cst_11 [0] : vector<40x128xf32> to vector<128xf32>
    %32 = vector.shape_cast %31 : vector<128xf32> to vector<1x128xf32>
    %33 = vector.broadcast %32 : vector<1x128xf32> to vector<40x128xf32>
    %34 = arith.subf %30, %33 : vector<40x128xf32>
    %35 = math.exp %34 : vector<40x128xf32>
    %cst_12 = arith.constant dense<0.000000e+00> : vector<128xf32>
    %36 = vector.multi_reduction <add>, %35, %cst_12 [0] : vector<40x128xf32> to vector<128xf32>
    %37 = vector.shape_cast %36 : vector<128xf32> to vector<1x128xf32>
    %38 = math.log %37 : vector<1x128xf32>
    %39 = arith.addf %32, %38 : vector<1x128xf32>
    %40 = vector.shape_cast %39 : vector<1x128xf32> to vector<1x1x128xf32>
    %c0_13 = arith.constant 0 : index
    %c0_14 = arith.constant 0 : index
    %c0_15 = arith.constant 0 : index
    %41 = vector.load %arg5[%c0_13, %c0_14, %c0_15] : memref<1x1x128xf32, #tpu.memory_space<vmem>>, vector<1x1x128xf32>
    tpu.vector_store %arg5[%c0_13, %c0_14, %c0_15], %40 {strides = array<i32>} : memref<1x1x128xf32, #tpu.memory_space<vmem>>, vector<1x1x128xf32>,
    return
  }
  func.func @transform_0(%arg0: i32) -> (i32, i32) {
    %c0_i32 = arith.constant 0 : i32
    %c0_i32_0 = arith.constant 0 : i32
    return %arg0, %c0_i32 : i32, i32
  }
  func.func @transform_1(%arg0: i32) -> (i32, i32) {
    %c0_i32 = arith.constant 0 : i32
    %c0_i32_0 = arith.constant 0 : i32
    %c0_i32_1 = arith.constant 0 : i32
    return %c0_i32, %c0_i32_0 : i32, i32
  }
  func.func @transform_2(%arg0: i32) -> (i32, i32) {
    %c0_i32 = arith.constant 0 : i32
    %c0_i32_0 = arith.constant 0 : i32
    %c0_i32_1 = arith.constant 0 : i32
    return %c0_i32, %c0_i32_0 : i32, i32
  }
  func.func @transform_3(%arg0: i32) -> (i32, i32) {
    %c0_i32 = arith.constant 0 : i32
    %c0_i32_0 = arith.constant 0 : i32
    %c0_i32_1 = arith.constant 0 : i32
    return %c0_i32, %c0_i32_0 : i32, i32
  }
  func.func @transform_4(%arg0: i32) -> (i32, i32, i32) {
    %c0_i32 = arith.constant 0 : i32
    %c0_i32_0 = arith.constant 0 : i32
    %c0_i32_1 = arith.constant 0 : i32
    return %arg0, %c0_i32, %c0_i32_0 : i32, i32, i32
  }
}

</mosaic_0001>

<llo_original>
// kernel: tpu_custom_call.1
$region0: #{tpu_custom_call.1}
  #allocation0 [shape = 'u32[]', space=smem, size = 0x4, offset = 0x4, fixed_abs, tag = 'smem constant byte address 0x4 - core index']
  #allocation1 [shape = 'u32[144,128]{1,0:T(1,128)}', space=vmem, size = 0x12000, scoped, tag = 'internal scratch']
  %s0 = inlined_call_operand.vmem [shape: f32[72,32], index: 0, kind: input, shape index: {}]
  %s1 = inlined_call_operand.vmem [shape: bf16[32,128], index: 1, kind: input, shape index: {}]
  %s2 = inlined_call_operand.vmem [shape: bf16[128,128], index: 2, kind: input, shape index: {}]
  %s3 = inlined_call_operand.vmem [shape: f32[1,128], index: 3, kind: input, shape index: {}]
  %s4 = inlined_call_operand.hbm [shape: f32[2,1,128], index: 4, kind: output, shape index: {}]
  %s5 = sld [smem:[#allocation0]]
  $region49: #{tpu_custom_call.1} parent=0
    _
  %s7 = ssub.s32 1, %s5
  %s8 = scalar_select 0, %s7, %s5
  $region1: #{tpu_custom_call.1} parent=0
    #allocation2 [shape = 'u8[1024]{0}', space=vmem, size = 0x400, scoped, tag = 'output window, operand 0']
    #allocation3 [shape = 's32[2]{0}', space=sflag, size = 0x8, scoped, tag = 'scoped memory for tpu_custom_call.1']
    %9 = vsyncpa [#allocation3], 0
    %s10 = scalar_lea.sflag [#allocation3], 1
    %11 = vsyncpa %s10, 0
    loop: start=0, step=1, limit=4
    $region2: #{tpu_custom_call.1} parent=1 // loop_pre_header
      _
    $region3: #{tpu_custom_call.1} parent=1 // loop_header
      %s13 = sphi 0, %s17
      %p14 = scmp.ge.s32.totalorder %s13, 4
      %s23 = sphi 0, %s25
      %s26 = sphi 0, %s23
      %s27 = sphi 0, %s26
      %s43 = sphi 0, %s27
      %s47 = sphi 0, %s47
      %s49 = sphi 0, %s47
      %s50 = sphi 0, %s49
      %s64 = sphi 0, %s50
      %s68 = sphi 0, %s68
      %s70 = sphi 0, %s68
      %s71 = sphi 0, %s70
      %s85 = sphi 0, %s71
      %s89 = sphi 0, %s89
      %s91 = sphi 0, %s89
      %s92 = sphi 0, %s91
      %s106 = sphi 0, %s92
      %s112 = sphi 0, %s114
      %s115 = sphi 0, %s112
      %s116 = sphi 0, %s115
      %s132 = sphi 0, %s116
    $region4: #{tpu_custom_call.1} parent=1 // loop_header_branch
      %16 = sbr.rel (%p14) target = $region8
    $region5: #{tpu_custom_call.1} parent=1 // loop_body
      %s18 = ssub.s32 %s13, 1
      %s19 = ssub.s32 %s13, 2
      %s20 = sadd.s32 %s13, 1
      %s21 = ssub.s32 %s13, %s20
      %p22 = scmp.eq.s32.totalorder %s21, 0
      %s24 = sadd.s32 %s23, 1
      %s25 = scalar_select %p22, %s23, %s24
      %p28 = pneg %p22
      %p29 = scmp.eq.s32.totalorder %s13, 1
      %p30 = por %p28, %p29
      %p31 = scmp.ne.s32.totalorder %s23, %s26
      %p32 = scmp.eq.s32.totalorder %s13, 0
      %p33 = por %p31, %p32
      %p34 = scmp.ne.s32.totalorder %s23, %s26
      %p35 = scmp.eq.s32.totalorder %s18, 1
      %p36 = por %p34, %p35
      %p37 = scmp.ne.s32.totalorder %s26, %s27
      %p38 = scmp.eq.s32.totalorder %s18, 0
      %p39 = por %p37, %p38
      %p40 = scmp.ne.s32.totalorder %s26, %s27
      %p41 = scmp.eq.s32.totalorder %s19, 1
      %p42 = por %p40, %p41
      %p44 = scmp.ne.s32.totalorder %s27, %s43
      %p45 = scmp.eq.s32.totalorder %s19, 0
      %p46 = por %p44, %p45
      %s48 = sadd.s32 %s47, 1
      %p51 = scmp.eq.s32.totalorder %s13, 1
      %p52 = scmp.ne.s32.totalorder %s47, %s49
      %p53 = scmp.eq.s32.totalorder %s13, 0
      %p54 = por %p52, %p53
      %p55 = scmp.ne.s32.totalorder %s47, %s49
      %p56 = scmp.eq.s32.totalorder %s18, 1
      %p57 = por %p55, %p56
      %p58 = scmp.ne.s32.totalorder %s49, %s50
      %p59 = scmp.eq.s32.totalorder %s18, 0
      %p60 = por %p58, %p59
      %p61 = scmp.ne.s32.totalorder %s49, %s50
      %p62 = scmp.eq.s32.totalorder %s19, 1
      %p63 = por %p61, %p62
      %p65 = scmp.ne.s32.totalorder %s50, %s64
      %p66 = scmp.eq.s32.totalorder %s19, 0
      %p67 = por %p65, %p66
      %s69 = sadd.s32 %s68, 1
      %p72 = scmp.eq.s32.totalorder %s13, 1
      %p73 = scmp.ne.s32.totalorder %s68, %s70
      %p74 = scmp.eq.s32.totalorder %s13, 0
      %p75 = por %p73, %p74
      %p76 = scmp.ne.s32.totalorder %s68, %s70
      %p77 = scmp.eq.s32.totalorder %s18, 1
      %p78 = por %p76, %p77
      %p79 = scmp.ne.s32.totalorder %s70, %s71
      %p80 = scmp.eq.s32.totalorder %s18, 0
      %p81 = por %p79, %p80
      %p82 = scmp.ne.s32.totalorder %s70, %s71
      %p83 = scmp.eq.s32.totalorder %s19, 1
      %p84 = por %p82, %p83
      %p86 = scmp.ne.s32.totalorder %s71, %s85
      %p87 = scmp.eq.s32.totalorder %s19, 0
      %p88 = por %p86, %p87
      %s90 = sadd.s32 %s89, 1
      %p93 = scmp.eq.s32.totalorder %s13, 1
      %p94 = scmp.ne.s32.totalorder %s89, %s91
      %p95 = scmp.eq.s32.totalorder %s13, 0
      %p96 = por %p94, %p95
      %p97 = scmp.ne.s32.totalorder %s89, %s91
      %p98 = scmp.eq.s32.totalorder %s18, 1
      %p99 = por %p97, %p98
      %p100 = scmp.ne.s32.totalorder %s91, %s92
      %p101 = scmp.eq.s32.totalorder %s18, 0
      %p102 = por %p100, %p101
      %p103 = scmp.ne.s32.totalorder %s91, %s92
      %p104 = scmp.eq.s32.totalorder %s19, 1
      %p105 = por %p103, %p104
      %p107 = scmp.ne.s32.totalorder %s92, %s106
      %p108 = scmp.eq.s32.totalorder %s19, 0
      %p109 = por %p107, %p108
      %s110 = ssub.s32 %s13, %s20
      %p111 = scmp.eq.s32.totalorder %s110, 0
      %s113 = sadd.s32 %s112, 1
      %s114 = scalar_select %p111, %s112, %s113
      %p117 = pneg %p111
      %p118 = scmp.eq.s32.totalorder %s13, 1
      %p119 = por %p117, %p118
      %p120 = scmp.ne.s32.totalorder %s112, %s115
      %p121 = scmp.eq.s32.totalorder %s13, 0
      %p122 = por %p120, %p121
      %p123 = scmp.ne.s32.totalorder %s112, %s115
      %p124 = scmp.eq.s32.totalorder %s18, 1
      %p125 = por %p123, %p124
      %p126 = scmp.ne.s32.totalorder %s115, %s116
      %p127 = scmp.eq.s32.totalorder %s18, 0
      %p128 = por %p126, %p127
      %p129 = scmp.ne.s32.totalorder %s115, %s116
      %p130 = scmp.eq.s32.totalorder %s19, 1
      %p131 = por %p129, %p130
      %p133 = scmp.ne.s32.totalorder %s116, %s132
      %p134 = scmp.eq.s32.totalorder %s19, 0
      %p135 = por %p133, %p134
      %p136 = scmp.le.s32.totalorder 1, %s13
      %p137 = scmp.lt.s32.totalorder %s13, 3
      %p138 = pnand %p136, %p137
      %p139 = pneg %p138
      // Predicated region
      $region9: #{tpu_custom_call.1} parent=5 // pred_check
        _
      $region10: #{tpu_custom_call.1} parent=5 // pred_check_branch
        %141 = sbr.rel (%p138) target = $region12
      $region11: #{tpu_custom_call.1} parent=5 // pred_region
        %s142 = ssub.s32 %s13, 1
        // Predicated region
        $region13: #{tpu_custom_call.1} parent=11 // pred_check
          %p143 = pneg %p60
        $region14: #{tpu_custom_call.1} parent=11 // pred_check_branch
          %145 = sbr.rel (%p143) target = $region16
        $region15: #{tpu_custom_call.1} parent=11 // pred_region
          _
        $region16: #{tpu_custom_call.1} parent=11 // pred_fallthru
          _
        // Predicated region
        $region17: #{tpu_custom_call.1} parent=11 // pred_check
          %p146 = pneg %p81
        $region18: #{tpu_custom_call.1} parent=11 // pred_check_branch
          %148 = sbr.rel (%p146) target = $region20
        $region19: #{tpu_custom_call.1} parent=11 // pred_region
          _
        $region20: #{tpu_custom_call.1} parent=11 // pred_fallthru
          _
        // Predicated region
        $region21: #{tpu_custom_call.1} parent=11 // pred_check
          %p149 = pneg %p102
        $region22: #{tpu_custom_call.1} parent=11 // pred_check_branch
          %151 = sbr.rel (%p149) target = $region24
        $region23: #{tpu_custom_call.1} parent=11 // pred_region
          _
        $region24: #{tpu_custom_call.1} parent=11 // pred_fallthru
          _
      $region12: #{tpu_custom_call.1} parent=5 // pred_fallthru
        _
      %p152 = scmp.lt.s32.totalorder %s13, 2
      // Predicated region
      $region25: #{tpu_custom_call.1} parent=5 // pred_check
        %p153 = pneg %p152
      $region26: #{tpu_custom_call.1} parent=5 // pred_check_branch
        %155 = sbr.rel (%p153) target = $region28
      $region27: #{tpu_custom_call.1} parent=5 // pred_region
        // Predicated region
        $region29: #{tpu_custom_call.1} parent=27 // pred_check
          %p156 = pneg %p33
        $region30: #{tpu_custom_call.1} parent=27 // pred_check_branch
          %158 = sbr.rel (%p156) target = $region32
        $region31: #{tpu_custom_call.1} parent=27 // pred_region
          %s159 = smul.u32 5, %s13
          %s160 = ssub.s32 9, %s159
          %p161 = scmp.lt.s32.totalorder %s160, 5
          %s162 = scalar_select %p161, %s160, 5
          %s163 = smul.u32 128, %s162
          %p164 = scmp.lt.s32.totalorder %s159, 8
          %s165 = scalar_select %p164, %s159, 8
          %s166 = smul.addr %s165, 8
          %s167 = scalar_lea.vmem %s0, %s166
          %s168 = smul.u32 5, %s13
          %s169 = ssub.s32 9, %s168
          %p170 = scmp.lt.s32.totalorder %s169, 5
          %s171 = scalar_select %p170, %s169, 5
          %s172 = smul.u32 128, %s171
        $region32: #{tpu_custom_call.1} parent=27 // pred_fallthru
          _
      $region28: #{tpu_custom_call.1} parent=5 // pred_fallthru
        _
      %p173 = scmp.le.s32.totalorder 1, %s13
      %p174 = scmp.lt.s32.totalorder %s13, 3
      %p175 = pnand %p173, %p174
      %p176 = pneg %p175
      // Predicated region
      $region33: #{tpu_custom_call.1} parent=5 // pred_check
        _
      $region34: #{tpu_custom_call.1} parent=5 // pred_check_branch
        %178 = sbr.rel (%p175) target = $region36
      $region35: #{tpu_custom_call.1} parent=5 // pred_region
        %s179 = ssub.s32 %s13, 1
        %s180 = smul.u32 5, %s18
        %s181 = ssub.s32 9, %s180
        %p182 = scmp.lt.s32.totalorder %s181, 5
        %s183 = scalar_select %p182, %s181, 5
        %s184 = smul.u32 128, %s183
        %p185 = scmp.lt.s32.totalorder %s180, 8
        %s186 = scalar_select %p185, %s180, 8
        %s187 = smul.addr %s186, 8
        %s188 = scalar_lea.vmem %s0, %s187
        %p189 = pneg %p39
        %p190 = pneg %p36
        %p191 = pneg %p60
        %p192 = pneg %p57
        %p193 = pneg %p81
        %p194 = pneg %p78
        %p195 = pneg %p102
        %p196 = pneg %p99
        %p197 = pneg %p128
        %p198 = pneg %p125
        %s199 = sand.u32 %s115, 1
        %s200 = scalar_lea.sflag [#allocation3], %s199
        %s201 = sand.u32 %s115, 1
        %s202 = scalar_lea.vmem [#allocation2], %s201
        %s203 = smul.u32 5, %s18
        %s204 = ssub.s32 9, %s203
        %p205 = scmp.lt.s32.totalorder %s204, 5
        %s206 = scalar_select %p205, %s204, 5
        %s207 = smul.u32 128, %s206
        %p208 = scmp.lt.s32.totalorder %s203, 8
        %s209 = scalar_select %p208, %s203, 8
        %s210 = smul.addr %s209, 8
        %s211 = scalar_lea.vmem %s0, %s210
        %s212 = smul.u32 5, %s18
        %s213 = ssub.s32 9, %s212
        %p214 = scmp.lt.s32.totalorder %s213, 5
        %s215 = scalar_select %p214, %s213, 5
        %s216 = smul.u32 128, %s215
        %v218 = vld [vmem:[%s211] sm:$0xff]
        %v219 = vld [vmem:[%s211 + $0x8] sm:$0xff]
        %v220 = vld [vmem:[%s211 + $0x10] sm:$0xff]
        %v221 = vld [vmem:[%s211 + $0x18] sm:$0xff]
        %v222 = vld [vmem:[%s211 + $0x20] sm:$0xff]
        %v223 = vpack.c.bf16 %v219, %v218
        %v224 = vpack.c.bf16 %v221, %v220
        %v225 = vpack.c.bf16 %v222, %v222
        %v226 = vld [vmem:[%s1] sm:$0xf]
        %v227 = vld [vmem:[%s1 + $0x4] sm:$0xf]
        %v228 = vld [vmem:[%s1 + $0x8] sm:$0xf]
        %v229 = vld [vmem:[%s1 + $0xc] sm:$0xf]
        %v230 = vld [vmem:[%s3] sm:$0x1]
        %v232 = vlaneseq
        %v233 = vshrl.u32 %v232, 7
        %v234 = vsub.s32 0, %v233
        %v235 = vrot.slane %v230, %v234
        %v241 = vunpack.c.l.b16 %v226
        %v242 = vunpack.c.l.b16 %v227
        %v243 = vunpack.c.l.b16 %v228
        %v244 = vunpack.c.l.b16 %v229
        %v245 = vpack.c.b16 %v242, %v241
        %v246 = vpack.c.b16 %v244, %v243
        %vm249 = vcmask 261120
        %v251 = vsel %vm249, %v223, 0
        %v254 = vsel %vm249, %v224, 0
        %v257 = vsel %vm249, %v225, 0
        %259 = vmatprep.subr.bf16.mxu0 0
        %260 = vmatpush1.bf16.msra.mxu0 %v245
        %261 = vmatprep.subr.bf16.mxu0 0
        %262 = vmatpush1.bf16.msra.mxu0 %v246
        %263 = vmatprep.subr.bf16.mxu0 0
        %264 = vmatpush1.bf16.msra.mxu0 0
        %265 = vmatprep.subr.bf16.mxu0 0
        %266 = vmatpush1.bf16.msra.mxu0 0
        %267 = vmatprep.subr.bf16.mxu0 0
        %268 = vmatpush1.bf16.msra.mxu0 0
        %269 = vmatprep.subr.bf16.mxu0 0
        %270 = vmatpush1.bf16.msra.mxu0 0
        %271 = vmatprep.subr.bf16.mxu0 0
        %272 = vmatpush1.bf16.msra.mxu0 0
        %273 = vmatprep.subr.bf16.mxu0 0
        %274 = vmatpush1.bf16.msra.mxu0 0
        %275 = vmatprep.subr.bf16.mxu0 0
        %276 = vmatpush1.bf16.msra.mxu0 0
        %277 = vmatprep.subr.bf16.mxu0 0
        %278 = vmatpush1.bf16.msra.mxu0 0
        %279 = vmatprep.subr.bf16.mxu0 0
        %280 = vmatpush1.bf16.msra.mxu0 0
        %281 = vmatprep.subr.bf16.mxu0 0
        %282 = vmatpush1.bf16.msra.mxu0 0
        %283 = vmatprep.subr.bf16.mxu0 0
        %284 = vmatpush1.bf16.msra.mxu0 0
        %285 = vmatprep.subr.bf16.mxu0 0
        %286 = vmatpush1.bf16.msra.mxu0 0
        %287 = vmatprep.subr.bf16.mxu0 0
        %288 = vmatpush1.bf16.msra.mxu0 0
        %289 = vmatprep.subr.bf16.mxu0 0
        %290 = vmatpush1.bf16.msra.mxu0 0
        %291 = vmatprep.mubr.bf16.mxu0 0
        %292 = vmatmul.mubr.bf16.gmra.mrb[0].mxu0 %v251
        %v293 = vpop.f32.mrb[0].mxu0
        %v294 = vadd.f32 %v235, %v293
        %v295 = vpop.f32.mrb[0].mxu0
        %v296 = vpop.f32.mrb[0].mxu0
        %v297 = vadd.f32 %v235, %v296
        %v298 = vpop.f32.mrb[0].mxu0
        %299 = vmatprep.mubr.bf16.mxu0 0
        %300 = vmatmul.mubr.bf16.gmra.mrb[0].mxu0 %v254
        %v301 = vpop.f32.mrb[0].mxu0
        %v302 = vadd.f32 %v235, %v301
        %v303 = vpop.f32.mrb[0].mxu0
        %v304 = vpop.f32.mrb[0].mxu0
        %v305 = vadd.f32 %v235, %v304
        %v306 = vpop.f32.mrb[0].mxu0
        %307 = vmatprep.mubr.bf16.mxu0 0
        %308 = vmatmul.mubr.bf16.gmra.mrb[0].mxu0 %v257
        %v309 = vpop.f32.mrb[0].mxu0
        %v310 = vadd.f32 %v235, %v309
        %v311 = vpop.f32.mrb[0].mxu0
        %v312 = vpop.f32.mrb[0].mxu0
        %v313 = vpop.f32.mrb[0].mxu0
        %314 = vdwg.mxu0
        %315 = vmax.xlane.f32.xlu0 %v294
        %v316 = vpop.xlane.xlu0 %315
        %317 = vmax.xlane.f32.xlu0 %v297
        %v318 = vpop.xlane.xlu0 %317
        %319 = vmax.xlane.f32.xlu0 %v302
        %v320 = vpop.xlane.xlu0 %319
        %321 = vmax.xlane.f32.xlu0 %v305
        %v322 = vpop.xlane.xlu0 %321
        %323 = vmax.xlane.f32.xlu0 %v310
        %v324 = vpop.xlane.xlu0 %323
        %v325 = vsub.f32 %v294, %v316
        %v326 = vsub.f32 %v297, %v318
        %v327 = vsub.f32 %v302, %v320
        %v328 = vsub.f32 %v305, %v322
        %v329 = vsub.f32 %v310, %v324
        %v330 = vmul.f32 %v325, 1.442695
        %v331 = vpow.pop %v330
        %v332 = vmul.f32 %v326, 1.442695
        %v333 = vpow.pop %v332
        %v334 = vmul.f32 %v327, 1.442695
        %v335 = vpow.pop %v334
        %v336 = vmul.f32 %v328, 1.442695
        %v337 = vpow.pop %v336
        %v338 = vmul.f32 %v329, 1.442695
        %v339 = vpow.pop %v338
        %v340 = vpack.c.bf16 %v333, %v331
        %v341 = vpack.c.bf16 %v337, %v335
        %v342 = vpack.c.bf16 %v339, %v339
        %v343 = vld [vmem:[%s2] sm:$0xf]
        %v344 = vld [vmem:[%s2 + $0x4] sm:$0xf]
        %v345 = vld [vmem:[%s2 + $0x8] sm:$0xf]
        %v346 = vld [vmem:[%s2 + $0xc] sm:$0xf]
        %v347 = vld [vmem:[%s2 + $0x10] sm:$0xf]
        %v348 = vld [vmem:[%s2 + $0x14] sm:$0xf]
        %v349 = vld [vmem:[%s2 + $0x18] sm:$0xf]
        %v350 = vld [vmem:[%s2 + $0x1c] sm:$0xf]
        %v351 = vld [vmem:[%s2 + $0x20] sm:$0xf]
        %v352 = vld [vmem:[%s2 + $0x24] sm:$0xf]
        %v353 = vld [vmem:[%s2 + $0x28] sm:$0xf]
        %v354 = vld [vmem:[%s2 + $0x2c] sm:$0xf]
        %v355 = vld [vmem:[%s2 + $0x30] sm:$0xf]
        %v356 = vld [vmem:[%s2 + $0x34] sm:$0xf]
        %v357 = vld [vmem:[%s2 + $0x38] sm:$0xf]
        %v358 = vld [vmem:[%s2 + $0x3c] sm:$0xf]
        %v375 = vunpack.c.l.b16 %v343
        %v376 = vunpack.c.l.b16 %v344
        %v377 = vunpack.c.l.b16 %v345
        %v378 = vunpack.c.l.b16 %v346
        %v379 = vunpack.c.l.b16 %v347
        %v380 = vunpack.c.l.b16 %v348
        %v381 = vunpack.c.l.b16 %v349
        %v382 = vunpack.c.l.b16 %v350
        %v383 = vunpack.c.l.b16 %v351
        %v384 = vunpack.c.l.b16 %v352
        %v385 = vunpack.c.l.b16 %v353
        %v386 = vunpack.c.l.b16 %v354
        %v387 = vunpack.c.l.b16 %v355
        %v388 = vunpack.c.l.b16 %v356
        %v389 = vunpack.c.l.b16 %v357
        %v390 = vunpack.c.l.b16 %v358
        %v391 = vpack.c.b16 %v376, %v375
        %v392 = vpack.c.b16 %v378, %v377
        %v393 = vpack.c.b16 %v380, %v379
        %v394 = vpack.c.b16 %v382, %v381
        %v395 = vpack.c.b16 %v384, %v383
        %v396 = vpack.c.b16 %v386, %v385
        %v397 = vpack.c.b16 %v388, %v387
        %v398 = vpack.c.b16 %v390, %v389
        %407 = vmatprep.subr.bf16.mxu0 0
        %408 = vmatpush1.bf16.msra.mxu0 %v391
        %409 = vmatprep.subr.bf16.mxu0 0
        %410 = vmatpush1.bf16.msra.mxu0 %v392
        %411 = vmatprep.subr.bf16.mxu0 0
        %412 = vmatpush1.bf16.msra.mxu0 %v393
        %413 = vmatprep.subr.bf16.mxu0 0
        %414 = vmatpush1.bf16.msra.mxu0 %v394
        %415 = vmatprep.subr.bf16.mxu0 0
        %416 = vmatpush1.bf16.msra.mxu0 %v395
        %417 = vmatprep.subr.bf16.mxu0 0
        %418 = vmatpush1.bf16.msra.mxu0 %v396
        %419 = vmatprep.subr.bf16.mxu0 0
        %420 = vmatpush1.bf16.msra.mxu0 %v397
        %421 = vmatprep.subr.bf16.mxu0 0
        %422 = vmatpush1.bf16.msra.mxu0 %v398
        %423 = vmatprep.subr.bf16.mxu0 0
        %424 = vmatpush1.bf16.msra.mxu0 0
        %425 = vmatprep.subr.bf16.mxu0 0
        %426 = vmatpush1.bf16.msra.mxu0 0
        %427 = vmatprep.subr.bf16.mxu0 0
        %428 = vmatpush1.bf16.msra.mxu0 0
        %429 = vmatprep.subr.bf16.mxu0 0
        %430 = vmatpush1.bf16.msra.mxu0 0
        %431 = vmatprep.subr.bf16.mxu0 0
        %432 = vmatpush1.bf16.msra.mxu0 0
        %433 = vmatprep.subr.bf16.mxu0 0
        %434 = vmatpush1.bf16.msra.mxu0 0
        %435 = vmatprep.subr.bf16.mxu0 0
        %436 = vmatpush1.bf16.msra.mxu0 0
        %437 = vmatprep.subr.bf16.mxu0 0
        %438 = vmatpush1.bf16.msra.mxu0 0
        %439 = vmatprep.mubr.bf16.mxu0 0
        %440 = vmatmul.mubr.bf16.gmra.mrb[0].mxu0 %v340
        %v441 = vpop.f32.mrb[0].mxu0
        %v442 = vadd.f32 0.0, %v441
        %v443 = vpop.f32.mrb[0].mxu0
        %v444 = vpop.f32.mrb[0].mxu0
        %v445 = vadd.f32 0.0, %v444
        %v446 = vpop.f32.mrb[0].mxu0
        %447 = vmatprep.mubr.bf16.mxu0 0
        %448 = vmatmul.mubr.bf16.gmra.mrb[0].mxu0 %v341
        %v449 = vpop.f32.mrb[0].mxu0
        %v450 = vadd.f32 0.0, %v449
        %v451 = vpop.f32.mrb[0].mxu0
        %v452 = vpop.f32.mrb[0].mxu0
        %v453 = vadd.f32 0.0, %v452
        %v454 = vpop.f32.mrb[0].mxu0
        %455 = vmatprep.mubr.bf16.mxu0 0
        %456 = vmatmul.mubr.bf16.gmra.mrb[0].mxu0 %v342
        %v457 = vpop.f32.mrb[0].mxu0
        %v458 = vadd.f32 0.0, %v457
        %v459 = vpop.f32.mrb[0].mxu0
        %v460 = vpop.f32.mrb[0].mxu0
        %v461 = vpop.f32.mrb[0].mxu0
        %462 = vdwg.mxu0
        %v463 = vmax.f32 %v442, 1.1754944e-38
        %v464 = vmax.f32 %v445, 1.1754944e-38
        %v465 = vmax.f32 %v450, 1.1754944e-38
        %v466 = vmax.f32 %v453, 1.1754944e-38
        %v467 = vmax.f32 %v458, 1.1754944e-38
        %v468 = vlog2.pop %v463
        %v469 = vmul.f32 %v468, 0.6931472
        %v470 = vlog2.pop %v464
        %v471 = vmul.f32 %v470, 0.6931472
        %v472 = vlog2.pop %v465
        %v473 = vmul.f32 %v472, 0.6931472
        %v474 = vlog2.pop %v466
        %v475 = vmul.f32 %v474, 0.6931472
        %v476 = vlog2.pop %v467
        %v477 = vmul.f32 %v476, 0.6931472
        %v478 = vadd.f32 %v316, %v469
        %v479 = vadd.f32 %v318, %v471
        %v480 = vadd.f32 %v320, %v473
        %v481 = vadd.f32 %v322, %v475
        %v482 = vadd.f32 %v324, %v477
        %v483 = vsub.f32 %v294, %v478
        %v484 = vsub.f32 %v297, %v479
        %v485 = vsub.f32 %v302, %v480
        %v486 = vsub.f32 %v305, %v481
        %v487 = vsub.f32 %v310, %v482
        %s488 = smul.u32 %s18, 40
        %v489 = vlaneseq
        %v490 = vshrl.u32 %v489, 7
        %v491 = vadd.s32 %v490, 8
        %v492 = vadd.s32 %v490, 16
        %v493 = vadd.s32 %v490, 24
        %v494 = vadd.s32 %v490, 32
        %v495 = vstv %s488
        %v496 = vadd.s32 %v495, %v490
        %v497 = vadd.s32 %v495, %v491
        %v498 = vadd.s32 %v495, %v492
        %v499 = vadd.s32 %v495, %v493
        %v500 = vadd.s32 %v495, %v494
        %vm501 = vcmp.lt.s32.totalorder %v496, 72
        %vm502 = vcmp.lt.s32.totalorder %v497, 72
        %vm503 = vcmp.lt.s32.totalorder %v498, 72
        %vm504 = vcmp.lt.s32.totalorder %v499, 72
        %vm505 = vcmp.lt.s32.totalorder %v500, 72
        %v506 = vsel %vm501, 1, 0
        %v507 = vsel %vm502, 1, 0
        %v508 = vsel %vm503, 1, 0
        %v509 = vsel %vm504, 1, 0
        %v510 = vsel %vm505, 1, 0
        %vm511 = vcmp.eq.s32.totalorder %v506, 1
        %vm512 = vcmp.eq.s32.totalorder %v507, 1
        %vm513 = vcmp.eq.s32.totalorder %v508, 1
        %vm514 = vcmp.eq.s32.totalorder %v509, 1
        %vm515 = vcmp.eq.s32.totalorder %v510, 1
        %v516 = vsel %vm511, %v483, -inf
        %v517 = vsel %vm512, %v484, -inf
        %v518 = vsel %vm513, %v485, -inf
        %v519 = vsel %vm514, %v486, -inf
        %v520 = vsel %vm515, %v487, -inf
        %v521 = vmax.f32 %v516, %v520
        %v522 = vmax.f32 %v521, %v517
        %v523 = vmax.f32 %v518, %v519
        %v524 = vmax.f32 %v522, %v523
        %v525 = vrot.slane %v524, 4
        %v526 = vmax.f32 %v524, %v525
        %v527 = vrot.slane %v526, 2
        %v528 = vmax.f32 %v526, %v527
        %v529 = vrot.slane %v528, 1
        %v530 = vmax.f32 %v528, %v529
        %v531 = vsub.f32 %v516, %v530
        %v532 = vsub.f32 %v517, %v530
        %v533 = vsub.f32 %v518, %v530
        %v534 = vsub.f32 %v519, %v530
        %v535 = vsub.f32 %v520, %v530
        %v536 = vmul.f32 %v531, 1.442695
        %v537 = vpow.pop %v536
        %v538 = vmul.f32 %v532, 1.442695
        %v539 = vpow.pop %v538
        %v540 = vmul.f32 %v533, 1.442695
        %v541 = vpow.pop %v540
        %v542 = vmul.f32 %v534, 1.442695
        %v543 = vpow.pop %v542
        %v544 = vmul.f32 %v535, 1.442695
        %v545 = vpow.pop %v544
        %v546 = vadd.f32 %v537, %v539
        %v547 = vadd.f32 %v546, %v541
        %v548 = vadd.f32 %v547, %v543
        %v549 = vadd.f32 %v548, %v545
        %v550 = vrot.slane %v549, 4
        %v551 = vadd.f32 %v549, %v550
        %v552 = vrot.slane %v551, 2
        %v553 = vadd.f32 %v551, %v552
        %v554 = vrot.slane %v553, 1
        %v555 = vadd.f32 %v553, %v554
        %v556 = vlog2.pop %v555
        %v557 = vmul.f32 %v556, 0.6931472
        %v558 = vadd.f32 %v530, %v557
        %559 = vst [vmem:[%s202] sm:$0x1] %v558
        %s560 = sand.u32 %s115, 1
        %s561 = scalar_lea.sflag [#allocation3], %s560
        %s562 = sand.u32 %s115, 1
        %s563 = scalar_lea.vmem [#allocation2], %s562
        // Predicated region
        $region37: #{tpu_custom_call.1} parent=35 // pred_check
          %p564 = pneg %p125
        $region38: #{tpu_custom_call.1} parent=35 // pred_check_branch
          %566 = sbr.rel (%p564) target = $region40
        $region39: #{tpu_custom_call.1} parent=35 // pred_region
          %s568 = ssub.s32 16, 16
          %569 = vsyncadd %s561, %s568
          %s570 = smul.addr %s18, 16
          %s571 = scalar_lea.hbm %s4, %s570
          %s573 = sshll.u32 %s563, 4
          %s574 = int_to_ptr.vmem [resolvable:$true] %s573
          %576 = dma.vmem_to_hbm [thread:$0]  %s574, 16, %s571, %s561
        $region40: #{tpu_custom_call.1} parent=35 // pred_fallthru
          _
      $region36: #{tpu_custom_call.1} parent=5 // pred_fallthru
        _
      %p577 = scmp.le.s32.totalorder 2, %s13
      // Predicated region
      $region41: #{tpu_custom_call.1} parent=5 // pred_check
        %p578 = pneg %p577
      $region42: #{tpu_custom_call.1} parent=5 // pred_check_branch
        %580 = sbr.rel (%p578) target = $region44
      $region43: #{tpu_custom_call.1} parent=5 // pred_region
        %s581 = ssub.s32 %s13, 2
        // Predicated region
        $region45: #{tpu_custom_call.1} parent=43 // pred_check
          %p582 = pneg %p131
        $region46: #{tpu_custom_call.1} parent=43 // pred_check_branch
          %584 = sbr.rel (%p582) target = $region48
        $region47: #{tpu_custom_call.1} parent=43 // pred_region
          %s585 = sand.u32 %s116, 1
          %s586 = scalar_lea.sflag [#allocation3], %s585
          %s587 = sand.u32 %s116, 1
          %s588 = scalar_lea.vmem [#allocation2], %s587
          %589 = dma.done %s586, 16
        $region48: #{tpu_custom_call.1} parent=43 // pred_fallthru
          _
      $region44: #{tpu_custom_call.1} parent=5 // pred_fallthru
        _
    $region6: #{tpu_custom_call.1} parent=1 // loop_footer
      %s17 = sadd.s32 1, %s13
    $region7: #{tpu_custom_call.1} parent=1 // loop_footer_branch
      %12 = sbr.rel target = $region3
    $region8: #{tpu_custom_call.1} parent=1 // loop_exit
      _
    %590 = vsyncpa [#allocation3], 1
    %s591 = scalar_lea.sflag [#allocation3], 1
    %592 = vsyncpa %s591, 1

</llo_original>
